<compile_context>
chip_gen: v7x
topology: tpu7x:2x2x1
jax: 0.10.0
libtpu: 0.0.40
codegen_flags: <defaults>
</compile_context>

<pallas_src>
import jax
import jax.numpy as jnp
from jax.experimental import pallas as pl
from jax.experimental.pallas import tpu as pltpu

STATE_SIZE = 24
ACTION_SIZE = 2
FC1 = 128
FC2 = 128
LANE = 128          # lane-dense padded width for the fc3 output
BN_EPS = 1e-5

# Row layout of the packed (8,128) parameter-vector tile.
ROW_G1, ROW_BE1, ROW_G2, ROW_BE2, ROW_B3 = 0, 1, 2, 3, 4


def _ceil_div(a, b):
    return (a + b - 1) // b


def _vmem_capacity_bytes():
    try:
        return int(pltpu.get_tpu_info().vmem_capacity_bytes)
    except Exception:
        return 64 << 20     # conservative fallback (v7x-sized VMEM)


def _whole_batch_budget():
    """(max rows for the single-block path, vmem_limit_bytes) per generation."""
    cap = _vmem_capacity_bytes()
    if cap >= (96 << 20):          # v5e / v6e: 128 MiB physical VMEM
        return 16384, 64 << 20
    return 8192, 40 << 20          # v7x: 64 MiB physical VMEM


# ---------------------------------------------------------------------------
# Whole-batch single-block kernel (small / medium B)
# ---------------------------------------------------------------------------

def _bn_relu_fused(h, gamma, beta):
    """Train-mode BatchNorm1d (biased variance, eps=1e-5) fused with ReLU.

    One sum/sumsq accumulation (f32) and a single h*scale+shift slab pass.
    """
    inv_n = 1.0 / h.shape[0]
    s = jnp.sum(h, axis=0, keepdims=True)
    ss = jnp.sum(h * h, axis=0, keepdims=True)
    mean = s * inv_n
    var = ss * inv_n - mean * mean           # keep in f32 (cancellation-safe here)
    scale = gamma * jax.lax.rsqrt(var + BN_EPS)
    shift = beta - mean * scale
    return jnp.maximum(h * scale + shift, 0.0)


def actor_kernel(x_ref, w1_ref, w2_ref, w3_ref, vecs_ref, out_ref):
    # Unpack the per-layer vectors from the single (8,128) f32 tile.
    g1 = vecs_ref[ROW_G1:ROW_G1 + 1, :]
    be1 = vecs_ref[ROW_BE1:ROW_BE1 + 1, :]
    g2 = vecs_ref[ROW_G2:ROW_G2 + 1, :]
    be2 = vecs_ref[ROW_BE2:ROW_BE2 + 1, :]
    b3 = vecs_ref[ROW_B3:ROW_B3 + 1, :]

    # fc1 (bias omitted: cancelled by train-mode BN) + bn1 + relu
    x = x_ref[...].astype(jnp.bfloat16)
    h = jnp.dot(x, w1_ref[...], preferred_element_type=jnp.float32)
    h = _bn_relu_fused(h, g1, be1)

    # fc2 (bias omitted) + bn2 + relu
    h = jnp.dot(h.astype(jnp.bfloat16), w2_ref[...],
                preferred_element_type=jnp.float32)
    h = _bn_relu_fused(h, g2, be2)

    # fc3 (lane-dense: padded to 128 output lanes) + tanh
    h = jnp.dot(h.astype(jnp.bfloat16), w3_ref[...],
                preferred_element_type=jnp.float32) + b3
    out_ref[...] = jnp.tanh(h)


def actor_forward_whole_batch(state, kp, vmem_limit_bytes):
    B = state.shape[0]
    vmem_spec = pl.BlockSpec(memory_space=pltpu.MemorySpace.VMEM)
    return pl.pallas_call(
        actor_kernel,
        out_shape=jax.ShapeDtypeStruct((B, LANE), jnp.float32),
        in_specs=[vmem_spec] * 5,
        out_specs=vmem_spec,
        compiler_params=pltpu.CompilerParams(vmem_limit_bytes=vmem_limit_bytes),
    )(state, kp["w1"], kp["w2"], kp["w3"], kp["vecs"])


# ---------------------------------------------------------------------------
# Batch-tiled two-pass-BN path (large B / v7x VMEM fit / dual TensorCore)
# ---------------------------------------------------------------------------

def _fc1_stats_kernel(x_ref, w1_ref, h1_ref, st_ref):
    # fc1 per tile; per-tile BN1 sum / sumsq partials (f32).
    h = jnp.dot(x_ref[...].astype(jnp.bfloat16), w1_ref[...],
                preferred_element_type=jnp.float32)
    h1_ref[...] = h.astype(h1_ref.dtype)
    # Zero-padded rows contribute exactly 0 (fc1 has no bias), no mask needed.
    s = jnp.sum(h, axis=0, keepdims=True)
    ss = jnp.sum(h * h, axis=0, keepdims=True)
    st_ref[...] = jnp.concatenate(
        [s, ss, jnp.zeros((6, FC1), jnp.float32)], axis=0)


def _make_mid_kernel(tb, b_real):
    def mid_kernel(h1_ref, w2_ref, vec_ref, h2_ref, st_ref):
        scale1 = vec_ref[0:1, :]
        shift1 = vec_ref[1:2, :]
        h1 = h1_ref[...].astype(jnp.float32)
        h1n = jnp.maximum(h1 * scale1 + shift1, 0.0)
        h2 = jnp.dot(h1n.astype(jnp.bfloat16), w2_ref[...],
                     preferred_element_type=jnp.float32)
        h2_ref[...] = h2.astype(h2_ref.dtype)
        # Padding rows have h1 == 0 -> h1n == max(shift1, 0) != 0 in general,
        # so they must be masked out of the BN2 statistics.
        row = (pl.program_id(0) * tb
               + jax.lax.broadcasted_iota(jnp.int32, (tb, FC2), 0))
        hm = jnp.where(row < b_real, h2, 0.0)
        s = jnp.sum(hm, axis=0, keepdims=True)
        ss = jnp.sum(hm * hm, axis=0, keepdims=True)
        st_ref[...] = jnp.concatenate(
            [s, ss, jnp.zeros((6, FC2), jnp.float32)], axis=0)
    return mid_kernel


def _out_kernel(h2_ref, w3_ref, vec_ref, out_ref):
    scale2 = vec_ref[0:1, :]
    shift2 = vec_ref[1:2, :]
    b3 = vec_ref[2:3, :]
    h2 = h2_ref[...].astype(jnp.float32)
    h2n = jnp.maximum(h2 * scale2 + shift2, 0.0)
    h3 = jnp.dot(h2n.astype(jnp.bfloat16), w3_ref[...],
                 preferred_element_type=jnp.float32) + b3
    out_ref[...] = jnp.tanh(h3)


def _bn_scale_shift(st, nt, n, gamma, beta):
    """Reduce per-tile (sum, sumsq) partials into BN scale/shift vectors."""
    st = st.reshape(nt, 8, -1)
    s = jnp.sum(st[:, 0, :], axis=0)
    ss = jnp.sum(st[:, 1, :], axis=0)
    mean = s / n
    var = ss / n - mean * mean
    scale = gamma * jax.lax.rsqrt(var + BN_EPS)
    shift = beta - mean * scale
    return scale, shift


def actor_forward_tiled(state, kp, tile_batch=1024):
    """Batch-tiled forward: 3 pipelined 'parallel' grids with per-tile BN partials."""
    B = state.shape[0]
    tb = int(tile_batch)
    assert tb % 128 == 0, "tile_batch must be a multiple of 128"
    nt = _ceil_div(B, tb)
    b_pad = nt * tb
    if b_pad != B:
        state = jnp.pad(state, ((0, b_pad - B), (0, 0)))
    vecs = kp["vecs"]
    par = pltpu.CompilerParams(dimension_semantics=("parallel",))

    # -- pass 1: fc1 per tile + per-tile BN1 sum / sumsq ---------------------
    h1, st1 = pl.pallas_call(
        _fc1_stats_kernel,
        grid=(nt,),
        out_shape=(jax.ShapeDtypeStruct((b_pad, FC1), jnp.bfloat16),
                   jax.ShapeDtypeStruct((nt * 8, FC1), jnp.float32)),
        in_specs=[pl.BlockSpec((tb, STATE_SIZE), lambda i: (i, 0)),
                  pl.BlockSpec((STATE_SIZE, FC1), lambda i: (0, 0))],
        out_specs=(pl.BlockSpec((tb, FC1), lambda i: (i, 0)),
                   pl.BlockSpec((8, FC1), lambda i: (i, 0))),
        compiler_params=par,
    )(state, kp["w1"])
    scale1, shift1 = _bn_scale_shift(st1, nt, B, vecs[ROW_G1], vecs[ROW_BE1])
    vec1 = jnp.zeros((8, FC1), jnp.float32).at[0].set(scale1).at[1].set(shift1)

    # -- pass 2: bn1+relu, fc2 per tile + per-tile BN2 sum / sumsq -----------
    h2, st2 = pl.pallas_call(
        _make_mid_kernel(tb, B),
        grid=(nt,),
        out_shape=(jax.ShapeDtypeStruct((b_pad, FC2), jnp.bfloat16),
                   jax.ShapeDtypeStruct((nt * 8, FC2), jnp.float32)),
        in_specs=[pl.BlockSpec((tb, FC1), lambda i: (i, 0)),
                  pl.BlockSpec((FC1, FC2), lambda i: (0, 0)),
                  pl.BlockSpec((8, FC1), lambda i: (0, 0))],
        out_specs=(pl.BlockSpec((tb, FC2), lambda i: (i, 0)),
                   pl.BlockSpec((8, FC2), lambda i: (i, 0))),
        compiler_params=par,
    )(h1, kp["w2"], vec1)
    scale2, shift2 = _bn_scale_shift(st2, nt, B, vecs[ROW_G2], vecs[ROW_BE2])
    vec2 = (jnp.zeros((8, LANE), jnp.float32)
            .at[0].set(scale2).at[1].set(shift2).at[2].set(vecs[ROW_B3]))

    # -- pass 3: bn2+relu, fc3 (lane-dense) + tanh ---------------------------
    out = pl.pallas_call(
        _out_kernel,
        grid=(nt,),
        out_shape=jax.ShapeDtypeStruct((b_pad, LANE), jnp.float32),
        in_specs=[pl.BlockSpec((tb, FC2), lambda i: (i, 0)),
                  pl.BlockSpec((FC2, LANE), lambda i: (0, 0)),
                  pl.BlockSpec((8, LANE), lambda i: (0, 0))],
        out_specs=pl.BlockSpec((tb, LANE), lambda i: (i, 0)),
        compiler_params=par,
    )(h2, kp["w3"], vec2)
    return out[:B]


# ---------------------------------------------------------------------------
# Public API
# ---------------------------------------------------------------------------

def pack_params(p):
    """One-time packing of params into kernel-ready operands.

    Weights stored in bf16 (MXU-native); BN affine params / fc3 bias stay f32
    in one (8,128) tile (g1 / be1 / g2 / be2 / b3-padded)."""
    vecs = jnp.zeros((8, LANE), jnp.float32)
    vecs = vecs.at[ROW_G1, :FC1].set(p["g1"].reshape(-1))
    vecs = vecs.at[ROW_BE1, :FC1].set(p["be1"].reshape(-1))
    vecs = vecs.at[ROW_G2, :FC2].set(p["g2"].reshape(-1))
    vecs = vecs.at[ROW_BE2, :FC2].set(p["be2"].reshape(-1))
    vecs = vecs.at[ROW_B3, :ACTION_SIZE].set(p["b3"].reshape(-1))
    w3p = jnp.zeros((FC2, LANE), jnp.float32).at[:, :ACTION_SIZE].set(p["w3"])
    return dict(w1=p["w1"].astype(jnp.bfloat16),
                w2=p["w2"].astype(jnp.bfloat16),
                w3=w3p.astype(jnp.bfloat16),
                vecs=vecs)


def actor_forward(state, kernel_params, *, tile_batch=1024, return_padded=False):
    """state: (B, STATE_SIZE) f32 -> (B, ACTION_SIZE) (or (B, LANE) if padded)."""
    B = state.shape[0]
    max_whole, vmem_limit = _whole_batch_budget()
    if B <= max_whole:
        out = actor_forward_whole_batch(state, kernel_params, vmem_limit)
    else:
        out = actor_forward_tiled(state, kernel_params, tile_batch)
    if return_padded:
        return out                # lanes ACTION_SIZE..127 are exactly zero
    return out[:, :ACTION_SIZE]


def init_params(key):
    """Deterministic init mimicking the PyTorch module's reset_parameters()."""
    ks = jax.random.split(key, 8)

    # hidden_init uses weight.size()[0] == out_features in PyTorch.
    lim1 = 1.0 / jnp.sqrt(jnp.float32(FC1))
    lim2 = 1.0 / jnp.sqrt(jnp.float32(FC2))

    # weights stored (in, out) so kernel does x @ W
    w1 = jax.random.uniform(ks[0], (STATE_SIZE, FC1), jnp.float32, -lim1, lim1)
    w2 = jax.random.uniform(ks[1], (FC1, FC2), jnp.float32, -lim2, lim2)
    w3 = jax.random.uniform(ks[2], (FC2, ACTION_SIZE), jnp.float32, -3e-3, 3e-3)

    # PyTorch Linear default bias init: U(-1/sqrt(fan_in), 1/sqrt(fan_in))
    b1 = jax.random.uniform(ks[3], (1, FC1), jnp.float32,
                            -1.0 / jnp.sqrt(jnp.float32(STATE_SIZE)),
                            1.0 / jnp.sqrt(jnp.float32(STATE_SIZE)))
    b2 = jax.random.uniform(ks[4], (1, FC2), jnp.float32,
                            -1.0 / jnp.sqrt(jnp.float32(FC1)),
                            1.0 / jnp.sqrt(jnp.float32(FC1)))
    b3 = jax.random.uniform(ks[5], (1, ACTION_SIZE), jnp.float32,
                            -1.0 / jnp.sqrt(jnp.float32(FC2)),
                            1.0 / jnp.sqrt(jnp.float32(FC2)))

    # BatchNorm1d affine params at their defaults.
    g1 = jnp.ones((1, FC1), jnp.float32)
    be1 = jnp.zeros((1, FC1), jnp.float32)
    g2 = jnp.ones((1, FC2), jnp.float32)
    be2 = jnp.zeros((1, FC2), jnp.float32)

    return dict(w1=w1, b1=b1, g1=g1, be1=be1,
                w2=w2, b2=b2, g2=g2, be2=be2,
                w3=w3, b3=b3)


def actor_forward_ref(state, p):
    """Pure-JAX f32 reference that mirrors PyTorch exactly (b1/b2 included)."""
    h = state @ p["w1"] + p["b1"]
    m = h.mean(0, keepdims=True)
    v = ((h - m) ** 2).mean(0, keepdims=True)
    h = jnp.maximum((h - m) / jnp.sqrt(v + BN_EPS) * p["g1"] + p["be1"], 0.0)
    h = h @ p["w2"] + p["b2"]
    m = h.mean(0, keepdims=True)
    v = ((h - m) ** 2).mean(0, keepdims=True)
    h = jnp.maximum((h - m) / jnp.sqrt(v + BN_EPS) * p["g2"] + p["be2"], 0.0)
    return jnp.tanh(h @ p["w3"] + p["b3"])


if __name__ == "__main__":
    key = jax.random.PRNGKey(0)
    pkey, xkey, xkey2 = jax.random.split(key, 3)
    params = init_params(pkey)
    kparams = pack_params(params)   # one-time packing of kernel operands

    # 1) Whole-batch single-block path (small B; BatchNorm needs B > 1).
    B = 8
    state = jax.random.normal(xkey, (B, STATE_SIZE), jnp.float32)
    mu = actor_forward(state, kparams)
    jax.block_until_ready(mu)
    mu_ref = actor_forward_ref(state, params)
    assert mu.shape == (B, ACTION_SIZE)
    # bf16 matmuls -> relaxed tolerance vs the f32 reference (which also
    # numerically validates the b1/b2 train-mode-BN cancellation).
    assert jnp.allclose(mu, mu_ref, atol=1e-2, rtol=2e-2), \
        float(jnp.max(jnp.abs(mu - mu_ref)))

    # 2) Batch-tiled two-pass-BN path (exercises padding + stats masking).
    B2 = 200
    state2 = jax.random.normal(xkey2, (B2, STATE_SIZE), jnp.float32)
    mu2 = actor_forward_tiled(state2, kparams, tile_batch=128)[:, :ACTION_SIZE]
    jax.block_until_ready(mu2)
    mu2_ref = actor_forward_ref(state2, params)
    assert mu2.shape == (B2, ACTION_SIZE)
    assert jnp.allclose(mu2, mu2_ref, atol=1e-2, rtol=2e-2), \
        float(jnp.max(jnp.abs(mu2 - mu2_ref)))

    print("KERNEL_OK")
</pallas_src>

<mosaic_0001>
module attributes {stable_mosaic.version = 11 : i64} {
  func.func @actor_kernel(%arg0: memref<8x24xf32, #tpu.memory_space<vmem>>, %arg1: memref<24x128xbf16, #tpu.memory_space<vmem>>, %arg2: memref<128x128xbf16, #tpu.memory_space<vmem>>, %arg3: memref<128x128xbf16, #tpu.memory_space<vmem>>, %arg4: memref<8x128xf32, #tpu.memory_space<vmem>>, %arg5: memref<8x128xf32, #tpu.memory_space<vmem>>) attributes {dimension_semantics = [], scalar_prefetch = 0 : i64, scratch_operands = 0 : i64, tpu.core_type = #tpu.core_type<tc>} {
    %c0 = arith.constant 0 : index
    %c0_0 = arith.constant 0 : index
    %0 = vector.load %arg4[%c0, %c0_0] : memref<8x128xf32, #tpu.memory_space<vmem>>, vector<1x128xf32>
    %c1 = arith.constant 1 : index
    %c0_1 = arith.constant 0 : index
    %1 = vector.load %arg4[%c1, %c0_1] : memref<8x128xf32, #tpu.memory_space<vmem>>, vector<1x128xf32>
    %c2 = arith.constant 2 : index
    %c0_2 = arith.constant 0 : index
    %2 = vector.load %arg4[%c2, %c0_2] : memref<8x128xf32, #tpu.memory_space<vmem>>, vector<1x128xf32>
    %c3 = arith.constant 3 : index
    %c0_3 = arith.constant 0 : index
    %3 = vector.load %arg4[%c3, %c0_3] : memref<8x128xf32, #tpu.memory_space<vmem>>, vector<1x128xf32>
    %c4 = arith.constant 4 : index
    %c0_4 = arith.constant 0 : index
    %4 = vector.load %arg4[%c4, %c0_4] : memref<8x128xf32, #tpu.memory_space<vmem>>, vector<1x128xf32>
    %c0_5 = arith.constant 0 : index
    %c0_6 = arith.constant 0 : index
    %5 = vector.load %arg0[%c0_5, %c0_6] : memref<8x24xf32, #tpu.memory_space<vmem>>, vector<8x24xf32>
    %6 = arith.truncf %5 : vector<8x24xf32> to vector<8x24xbf16>
    %c0_7 = arith.constant 0 : index
    %c0_8 = arith.constant 0 : index
    %7 = vector.load %arg1[%c0_7, %c0_8] : memref<24x128xbf16, #tpu.memory_space<vmem>>, vector<24x128xbf16>
    %cst = arith.constant dense<0.000000e+00> : vector<8x128xf32>
    %8 = tpu.matmul %6, %7, %cst {dimension_numbers = #tpu.dot_dimension_numbers<[1], [0], [0], [1], [0, 0, 1, 1], [], []>} : vector<8x24xbf16>, vector<24x128xbf16>, vector<8x128xf32> -> vector<8x128xf32>
    %cst_9 = arith.constant dense<0.000000e+00> : vector<128xf32>
    %9 = vector.multi_reduction <add>, %8, %cst_9 [0] : vector<8x128xf32> to vector<128xf32>
    %10 = vector.shape_cast %9 : vector<128xf32> to vector<1x128xf32>
    %11 = arith.mulf %8, %8 : vector<8x128xf32>
    %cst_10 = arith.constant dense<0.000000e+00> : vector<128xf32>
    %12 = vector.multi_reduction <add>, %11, %cst_10 [0] : vector<8x128xf32> to vector<128xf32>
    %13 = vector.shape_cast %12 : vector<128xf32> to vector<1x128xf32>
    %cst_11 = arith.constant 1.250000e-01 : f32
    %14 = vector.broadcast %cst_11 : f32 to vector<1x128xf32>
    %15 = arith.mulf %10, %14 : vector<1x128xf32>
    %cst_12 = arith.constant 1.250000e-01 : f32
    %16 = vector.broadcast %cst_12 : f32 to vector<1x128xf32>
    %17 = arith.mulf %13, %16 : vector<1x128xf32>
    %18 = arith.mulf %15, %15 : vector<1x128xf32>
    %19 = arith.subf %17, %18 : vector<1x128xf32>
    %cst_13 = arith.constant 9.99999974E-6 : f32
    %20 = vector.broadcast %cst_13 : f32 to vector<1x128xf32>
    %21 = arith.addf %19, %20 : vector<1x128xf32>
    %22 = math.rsqrt %21 : vector<1x128xf32>
    %23 = arith.mulf %0, %22 : vector<1x128xf32>
    %24 = arith.mulf %15, %23 : vector<1x128xf32>
    %25 = arith.subf %1, %24 : vector<1x128xf32>
    %26 = vector.broadcast %23 : vector<1x128xf32> to vector<8x128xf32>
    %27 = arith.mulf %8, %26 : vector<8x128xf32>
    %28 = vector.broadcast %25 : vector<1x128xf32> to vector<8x128xf32>
    %29 = arith.addf %27, %28 : vector<8x128xf32>
    %cst_14 = arith.constant 0.000000e+00 : f32
    %30 = vector.broadcast %cst_14 : f32 to vector<8x128xf32>
    %31 = arith.maximumf %29, %30 : vector<8x128xf32>
    %32 = arith.truncf %31 : vector<8x128xf32> to vector<8x128xbf16>
    %c0_15 = arith.constant 0 : index
    %c0_16 = arith.constant 0 : index
    %33 = vector.load %arg2[%c0_15, %c0_16] : memref<128x128xbf16, #tpu.memory_space<vmem>>, vector<128x128xbf16>
    %cst_17 = arith.constant dense<0.000000e+00> : vector<8x128xf32>
    %34 = tpu.matmul %32, %33, %cst_17 {dimension_numbers = #tpu.dot_dimension_numbers<[1], [0], [0], [1], [0, 0, 1, 1], [], []>} : vector<8x128xbf16>, vector<128x128xbf16>, vector<8x128xf32> -> vector<8x128xf32>
    %cst_18 = arith.constant dense<0.000000e+00> : vector<128xf32>
    %35 = vector.multi_reduction <add>, %34, %cst_18 [0] : vector<8x128xf32> to vector<128xf32>
    %36 = vector.shape_cast %35 : vector<128xf32> to vector<1x128xf32>
    %37 = arith.mulf %34, %34 : vector<8x128xf32>
    %cst_19 = arith.constant dense<0.000000e+00> : vector<128xf32>
    %38 = vector.multi_reduction <add>, %37, %cst_19 [0] : vector<8x128xf32> to vector<128xf32>
    %39 = vector.shape_cast %38 : vector<128xf32> to vector<1x128xf32>
    %cst_20 = arith.constant 1.250000e-01 : f32
    %40 = vector.broadcast %cst_20 : f32 to vector<1x128xf32>
    %41 = arith.mulf %36, %40 : vector<1x128xf32>
    %cst_21 = arith.constant 1.250000e-01 : f32
    %42 = vector.broadcast %cst_21 : f32 to vector<1x128xf32>
    %43 = arith.mulf %39, %42 : vector<1x128xf32>
    %44 = arith.mulf %41, %41 : vector<1x128xf32>
    %45 = arith.subf %43, %44 : vector<1x128xf32>
    %cst_22 = arith.constant 9.99999974E-6 : f32
    %46 = vector.broadcast %cst_22 : f32 to vector<1x128xf32>
    %47 = arith.addf %45, %46 : vector<1x128xf32>
    %48 = math.rsqrt %47 : vector<1x128xf32>
    %49 = arith.mulf %2, %48 : vector<1x128xf32>
    %50 = arith.mulf %41, %49 : vector<1x128xf32>
    %51 = arith.subf %3, %50 : vector<1x128xf32>
    %52 = vector.broadcast %49 : vector<1x128xf32> to vector<8x128xf32>
    %53 = arith.mulf %34, %52 : vector<8x128xf32>
    %54 = vector.broadcast %51 : vector<1x128xf32> to vector<8x128xf32>
    %55 = arith.addf %53, %54 : vector<8x128xf32>
    %cst_23 = arith.constant 0.000000e+00 : f32
    %56 = vector.broadcast %cst_23 : f32 to vector<8x128xf32>
    %57 = arith.maximumf %55, %56 : vector<8x128xf32>
    %58 = arith.truncf %57 : vector<8x128xf32> to vector<8x128xbf16>
    %c0_24 = arith.constant 0 : index
    %c0_25 = arith.constant 0 : index
    %59 = vector.load %arg3[%c0_24, %c0_25] : memref<128x128xbf16, #tpu.memory_space<vmem>>, vector<128x128xbf16>
    %cst_26 = arith.constant dense<0.000000e+00> : vector<8x128xf32>
    %60 = tpu.matmul %58, %59, %cst_26 {dimension_numbers = #tpu.dot_dimension_numbers<[1], [0], [0], [1], [0, 0, 1, 1], [], []>} : vector<8x128xbf16>, vector<128x128xbf16>, vector<8x128xf32> -> vector<8x128xf32>
    %61 = vector.broadcast %4 : vector<1x128xf32> to vector<8x128xf32>
    %62 = arith.addf %60, %61 : vector<8x128xf32>
    %63 = math.tanh %62 : vector<8x128xf32>
    %c0_27 = arith.constant 0 : index
    %c0_28 = arith.constant 0 : index
    %64 = vector.load %arg5[%c0_27, %c0_28] : memref<8x128xf32, #tpu.memory_space<vmem>>, vector<8x128xf32>
    tpu.vector_store %arg5[%c0_27, %c0_28], %63 {strides = array<i32>} : memref<8x128xf32, #tpu.memory_space<vmem>>, vector<8x128xf32>,
    return
  }
}

</mosaic_0001>

<llo_original>
// kernel: tpu_custom_call.1
$region0: #{tpu_custom_call.1}
  #allocation0 [shape = 'u32[]', space=smem, size = 0x4, offset = 0x4, fixed_abs, tag = 'smem constant byte address 0x4 - core index']
  #allocation1 [shape = 'u32[144,128]{1,0:T(1,128)}', space=vmem, size = 0x12000, scoped, tag = 'internal scratch']
  %s0 = inlined_call_operand.hbm [shape: f32[8,24], index: 0, kind: input, shape index: {}]
  %s1 = inlined_call_operand.hbm [shape: bf16[24,128], index: 1, kind: input, shape index: {}]
  %s2 = inlined_call_operand.hbm [shape: bf16[128,128], index: 2, kind: input, shape index: {}]
  %s3 = inlined_call_operand.hbm [shape: bf16[128,128], index: 3, kind: input, shape index: {}]
  %s4 = inlined_call_operand.vmem [shape: f32[8,128], index: 4, kind: input, shape index: {}]
  %s5 = inlined_call_operand.hbm [shape: f32[8,128], index: 5, kind: output, shape index: {}]
  %s6 = sld [smem:[#allocation0]]
  $region46: #{tpu_custom_call.1} parent=0
    _
  %s8 = ssub.s32 1, %s6
  %s9 = scalar_select 0, %s8, %s6
  $region1: #{tpu_custom_call.1} parent=0
    #allocation2 [shape = 'u8[4096]{0}', space=vmem, size = 0x1000, scoped, tag = 'input window, operand 0, single buffered']
    #allocation3 [shape = 's32[1]{0}', space=sflag, size = 0x4, scoped, tag = 'scoped memory for tpu_custom_call.1']
    #allocation4 [shape = 's32[1]{0}', space=sflag, size = 0x4, scoped, tag = 'scoped memory for tpu_custom_call.1']
    #allocation5 [shape = 'u8[6144]{0}', space=vmem, size = 0x1800, scoped, tag = 'input window, operand 1, single buffered']
    #allocation6 [shape = 's32[1]{0}', space=sflag, size = 0x4, scoped, tag = 'scoped memory for tpu_custom_call.1']
    #allocation7 [shape = 'u8[32768]{0}', space=vmem, size = 0x8000, scoped, tag = 'input window, operand 2, single buffered']
    #allocation8 [shape = 'u8[32768]{0}', space=vmem, size = 0x8000, scoped, tag = 'input window, operand 3, single buffered']
    #allocation9 [shape = 's32[1]{0}', space=sflag, size = 0x4, scoped, tag = 'scoped memory for tpu_custom_call.1']
    #allocation10 [shape = 'u8[4096]{0}', space=vmem, size = 0x1000, scoped, tag = 'output window, operand 0, single buffered']
    %10 = vsyncpa [#allocation3], 0
    %11 = vsyncpa [#allocation6], 0
    %12 = vsyncpa [#allocation9], 0
    %13 = vsyncpa [#allocation4], 0
    // Predicated region
    $region2: #{tpu_custom_call.1} parent=1 // pred_check
      _
    $region3: #{tpu_custom_call.1} parent=1 // pred_check_branch
      %15 = sbr.rel (0) target = $region5
    $region4: #{tpu_custom_call.1} parent=1 // pred_region
      %s17 = ssub.s32 128, 128
      %18 = vsyncadd [#allocation3], %s17
      %s20 = sshll.u32 [#allocation2], 4
      %s21 = int_to_ptr.vmem [resolvable:$true] %s20
      %23 = dma.hbm_to_vmem [thread:$0]  %s0, 128, %s21, [#allocation3]
    $region5: #{tpu_custom_call.1} parent=1 // pred_fallthru
      _
    // Predicated region
    $region6: #{tpu_custom_call.1} parent=1 // pred_check
      _
    $region7: #{tpu_custom_call.1} parent=1 // pred_check_branch
      %25 = sbr.rel (0) target = $region9
    $region8: #{tpu_custom_call.1} parent=1 // pred_region
      %s27 = ssub.s32 192, 192
      %28 = vsyncadd [#allocation6], %s27
      %s29 = sshll.u32 [#allocation5], 4
      %s30 = int_to_ptr.vmem [resolvable:$true] %s29
      %35 = dma.hbm_to_vmem [thread:$0]  %s1, 192, %s30, [#allocation6], 64, 64, 4
    $region9: #{tpu_custom_call.1} parent=1 // pred_fallthru
      _
    // Predicated region
    $region10: #{tpu_custom_call.1} parent=1 // pred_check
      _
    $region11: #{tpu_custom_call.1} parent=1 // pred_check_branch
      %37 = sbr.rel (0) target = $region13
    $region12: #{tpu_custom_call.1} parent=1 // pred_region
      %s39 = ssub.s32 1024, 1024
      %40 = vsyncadd [#allocation6], %s39
      %s41 = sshll.u32 [#allocation7], 4
      %s42 = int_to_ptr.vmem [resolvable:$true] %s41
      %47 = dma.hbm_to_vmem [thread:$0]  %s2, 1024, %s42, [#allocation6], 64, 64, 4
    $region13: #{tpu_custom_call.1} parent=1 // pred_fallthru
      _
    // Predicated region
    $region14: #{tpu_custom_call.1} parent=1 // pred_check
      _
    $region15: #{tpu_custom_call.1} parent=1 // pred_check_branch
      %49 = sbr.rel (0) target = $region17
    $region16: #{tpu_custom_call.1} parent=1 // pred_region
      %s51 = ssub.s32 1024, 1024
      %52 = vsyncadd [#allocation9], %s51
      %s53 = sshll.u32 [#allocation8], 4
      %s54 = int_to_ptr.vmem [resolvable:$true] %s53
      %59 = dma.hbm_to_vmem [thread:$0]  %s3, 1024, %s54, [#allocation9], 64, 64, 4
    $region17: #{tpu_custom_call.1} parent=1 // pred_fallthru
      _
    // Predicated region
    $region18: #{tpu_custom_call.1} parent=1 // pred_check
      _
    $region19: #{tpu_custom_call.1} parent=1 // pred_check_branch
      %61 = sbr.rel (0) target = $region21
    $region20: #{tpu_custom_call.1} parent=1 // pred_region
      _
    $region21: #{tpu_custom_call.1} parent=1 // pred_fallthru
      _
    // Predicated region
    $region22: #{tpu_custom_call.1} parent=1 // pred_check
      _
    $region23: #{tpu_custom_call.1} parent=1 // pred_check_branch
      %63 = sbr.rel (0) target = $region25
    $region24: #{tpu_custom_call.1} parent=1 // pred_region
      %64 = dma.done [#allocation3], 128
    $region25: #{tpu_custom_call.1} parent=1 // pred_fallthru
      _
    // Predicated region
    $region26: #{tpu_custom_call.1} parent=1 // pred_check
      _
    $region27: #{tpu_custom_call.1} parent=1 // pred_check_branch
      %66 = sbr.rel (0) target = $region29
    $region28: #{tpu_custom_call.1} parent=1 // pred_region
      %67 = dma.done [#allocation6], 192
    $region29: #{tpu_custom_call.1} parent=1 // pred_fallthru
      _
    // Predicated region
    $region30: #{tpu_custom_call.1} parent=1 // pred_check
      _
    $region31: #{tpu_custom_call.1} parent=1 // pred_check_branch
      %69 = sbr.rel (0) target = $region33
    $region32: #{tpu_custom_call.1} parent=1 // pred_region
      %70 = dma.done [#allocation6], 1024
    $region33: #{tpu_custom_call.1} parent=1 // pred_fallthru
      _
    // Predicated region
    $region34: #{tpu_custom_call.1} parent=1 // pred_check
      _
    $region35: #{tpu_custom_call.1} parent=1 // pred_check_branch
      %72 = sbr.rel (0) target = $region37
    $region36: #{tpu_custom_call.1} parent=1 // pred_region
      %73 = dma.done [#allocation9], 1024
    $region37: #{tpu_custom_call.1} parent=1 // pred_fallthru
      _
    %v75 = vld [vmem:[%s4] sm:$0x1]
    %v76 = vld [vmem:[%s4 + $0x1] sm:$0x1]
    %v77 = vld [vmem:[%s4 + $0x2] sm:$0x1]
    %v78 = vld [vmem:[%s4 + $0x3] sm:$0x1]
    %v79 = vld [vmem:[%s4 + $0x4] sm:$0x1]
    %v80 = vld [vmem:[#allocation2] sm:$0xff]
    %v81 = vpack.c.bf16 %v80, %v80
    %v82 = vld [vmem:[#allocation5] sm:$0xf]
    %v83 = vld [vmem:[#allocation5 + $0x4] sm:$0xf]
    %v84 = vld [vmem:[#allocation5 + $0x8] sm:$0xf]
    %v88 = vunpack.c.l.b16 %v82
    %v89 = vunpack.c.l.b16 %v83
    %v90 = vunpack.c.l.b16 %v84
    %v91 = vpack.c.b16 %v89, %v88
    %v92 = vpack.c.b16 %v90, %v90
    %vm94 = vcmask 195584
    %v96 = vsel %vm94, %v81, 0
    %vm98 = vcmask 1043456
    %v100 = vsel %vm98, %v92, 0
    %102 = vmatprep.subr.bf16.mxu0 0
    %103 = vmatpush1.bf16.msra.mxu0 %v91
    %104 = vmatprep.subr.bf16.mxu0 0
    %105 = vmatpush1.bf16.msra.mxu0 %v100
    %106 = vmatprep.subr.bf16.mxu0 0
    %107 = vmatpush1.bf16.msra.mxu0 0
    %108 = vmatprep.subr.bf16.mxu0 0
    %109 = vmatpush1.bf16.msra.mxu0 0
    %110 = vmatprep.subr.bf16.mxu0 0
    %111 = vmatpush1.bf16.msra.mxu0 0
    %112 = vmatprep.subr.bf16.mxu0 0
    %113 = vmatpush1.bf16.msra.mxu0 0
    %114 = vmatprep.subr.bf16.mxu0 0
    %115 = vmatpush1.bf16.msra.mxu0 0
    %116 = vmatprep.subr.bf16.mxu0 0
    %117 = vmatpush1.bf16.msra.mxu0 0
    %118 = vmatprep.subr.bf16.mxu0 0
    %119 = vmatpush1.bf16.msra.mxu0 0
    %120 = vmatprep.subr.bf16.mxu0 0
    %121 = vmatpush1.bf16.msra.mxu0 0
    %122 = vmatprep.subr.bf16.mxu0 0
    %123 = vmatpush1.bf16.msra.mxu0 0
    %124 = vmatprep.subr.bf16.mxu0 0
    %125 = vmatpush1.bf16.msra.mxu0 0
    %126 = vmatprep.subr.bf16.mxu0 0
    %127 = vmatpush1.bf16.msra.mxu0 0
    %128 = vmatprep.subr.bf16.mxu0 0
    %129 = vmatpush1.bf16.msra.mxu0 0
    %130 = vmatprep.subr.bf16.mxu0 0
    %131 = vmatpush1.bf16.msra.mxu0 0
    %132 = vmatprep.subr.bf16.mxu0 0
    %133 = vmatpush1.bf16.msra.mxu0 0
    %134 = vmatprep.mubr.bf16.mxu0 0
    %135 = vmatmul.mubr.bf16.gmra.mrb[0].mxu0 %v96
    %v136 = vpop.f32.mrb[0].mxu0
    %v137 = vadd.f32 0.0, %v136
    %v138 = vpop.f32.mrb[0].mxu0
    %v139 = vpop.f32.mrb[0].mxu0
    %v140 = vpop.f32.mrb[0].mxu0
    %141 = vdwg.mxu0
    %v142 = vrot.slane %v137, 4
    %v143 = vadd.f32 %v137, %v142
    %v144 = vrot.slane %v143, 2
    %v145 = vadd.f32 %v143, %v144
    %v146 = vrot.slane %v145, 1
    %v147 = vadd.f32 %v145, %v146
    %v148 = vmul.f32 %v137, %v137
    %v149 = vrot.slane %v148, 4
    %v150 = vadd.f32 %v148, %v149
    %v151 = vrot.slane %v150, 2
    %v152 = vadd.f32 %v150, %v151
    %v153 = vrot.slane %v152, 1
    %v154 = vadd.f32 %v152, %v153
    %v155 = vmul.f32 %v147, 0.125
    %v156 = vmul.f32 %v154, 0.125
    %v157 = vmul.f32 %v155, %v155
    %v158 = vsub.f32 %v156, %v157
    %v159 = vadd.f32 %v158, 1e-05
    %v160 = vrsqrt.pop %v159
    %v161 = vmul.f32 %v75, %v160
    %v162 = vmul.f32 %v155, %v161
    %v163 = vsub.f32 %v76, %v162
    %v164 = vlaneseq
    %v165 = vshrl.u32 %v164, 7
    %v166 = vsub.s32 0, %v165
    %v167 = vrot.slane %v161, %v166
    %v168 = vmul.f32 %v137, %v167
    %v169 = vlaneseq
    %v170 = vshrl.u32 %v169, 7
    %v171 = vsub.s32 0, %v170
    %v172 = vrot.slane %v163, %v171
    %v173 = vadd.f32 %v168, %v172
    %v174 = vmax.f32 %v173, 0.0
    %v175 = vpack.c.bf16 %v174, %v174
    %v176 = vld [vmem:[#allocation7] sm:$0xf]
    %v177 = vld [vmem:[#allocation7 + $0x4] sm:$0xf]
    %v178 = vld [vmem:[#allocation7 + $0x8] sm:$0xf]
    %v179 = vld [vmem:[#allocation7 + $0xc] sm:$0xf]
    %v180 = vld [vmem:[#allocation7 + $0x10] sm:$0xf]
    %v181 = vld [vmem:[#allocation7 + $0x14] sm:$0xf]
    %v182 = vld [vmem:[#allocation7 + $0x18] sm:$0xf]
    %v183 = vld [vmem:[#allocation7 + $0x1c] sm:$0xf]
    %v184 = vld [vmem:[#allocation7 + $0x20] sm:$0xf]
    %v185 = vld [vmem:[#allocation7 + $0x24] sm:$0xf]
    %v186 = vld [vmem:[#allocation7 + $0x28] sm:$0xf]
    %v187 = vld [vmem:[#allocation7 + $0x2c] sm:$0xf]
    %v188 = vld [vmem:[#allocation7 + $0x30] sm:$0xf]
    %v189 = vld [vmem:[#allocation7 + $0x34] sm:$0xf]
    %v190 = vld [vmem:[#allocation7 + $0x38] sm:$0xf]
    %v191 = vld [vmem:[#allocation7 + $0x3c] sm:$0xf]
    %v208 = vunpack.c.l.b16 %v176
    %v209 = vunpack.c.l.b16 %v177
    %v210 = vunpack.c.l.b16 %v178
    %v211 = vunpack.c.l.b16 %v179
    %v212 = vunpack.c.l.b16 %v180
    %v213 = vunpack.c.l.b16 %v181
    %v214 = vunpack.c.l.b16 %v182
    %v215 = vunpack.c.l.b16 %v183
    %v216 = vunpack.c.l.b16 %v184
    %v217 = vunpack.c.l.b16 %v185
    %v218 = vunpack.c.l.b16 %v186
    %v219 = vunpack.c.l.b16 %v187
    %v220 = vunpack.c.l.b16 %v188
    %v221 = vunpack.c.l.b16 %v189
    %v222 = vunpack.c.l.b16 %v190
    %v223 = vunpack.c.l.b16 %v191
    %v224 = vpack.c.b16 %v209, %v208
    %v225 = vpack.c.b16 %v211, %v210
    %v226 = vpack.c.b16 %v213, %v212
    %v227 = vpack.c.b16 %v215, %v214
    %v228 = vpack.c.b16 %v217, %v216
    %v229 = vpack.c.b16 %v219, %v218
    %v230 = vpack.c.b16 %v221, %v220
    %v231 = vpack.c.b16 %v223, %v222
    %240 = vmatprep.subr.bf16.mxu0 0
    %241 = vmatpush1.bf16.msra.mxu0 %v224
    %242 = vmatprep.subr.bf16.mxu0 0
    %243 = vmatpush1.bf16.msra.mxu0 %v225
    %244 = vmatprep.subr.bf16.mxu0 0
    %245 = vmatpush1.bf16.msra.mxu0 %v226
    %246 = vmatprep.subr.bf16.mxu0 0
    %247 = vmatpush1.bf16.msra.mxu0 %v227
    %248 = vmatprep.subr.bf16.mxu0 0
    %249 = vmatpush1.bf16.msra.mxu0 %v228
    %250 = vmatprep.subr.bf16.mxu0 0
    %251 = vmatpush1.bf16.msra.mxu0 %v229
    %252 = vmatprep.subr.bf16.mxu0 0
    %253 = vmatpush1.bf16.msra.mxu0 %v230
    %254 = vmatprep.subr.bf16.mxu0 0
    %255 = vmatpush1.bf16.msra.mxu0 %v231
    %256 = vmatprep.subr.bf16.mxu0 0
    %257 = vmatpush1.bf16.msra.mxu0 0
    %258 = vmatprep.subr.bf16.mxu0 0
    %259 = vmatpush1.bf16.msra.mxu0 0
    %260 = vmatprep.subr.bf16.mxu0 0
    %261 = vmatpush1.bf16.msra.mxu0 0
    %262 = vmatprep.subr.bf16.mxu0 0
    %263 = vmatpush1.bf16.msra.mxu0 0
    %264 = vmatprep.subr.bf16.mxu0 0
    %265 = vmatpush1.bf16.msra.mxu0 0
    %266 = vmatprep.subr.bf16.mxu0 0
    %267 = vmatpush1.bf16.msra.mxu0 0
    %268 = vmatprep.subr.bf16.mxu0 0
    %269 = vmatpush1.bf16.msra.mxu0 0
    %270 = vmatprep.subr.bf16.mxu0 0
    %271 = vmatpush1.bf16.msra.mxu0 0
    %272 = vmatprep.mubr.bf16.mxu0 0
    %273 = vmatmul.mubr.bf16.gmra.mrb[0].mxu0 %v175
    %v274 = vpop.f32.mrb[0].mxu0
    %v275 = vadd.f32 0.0, %v274
    %v276 = vpop.f32.mrb[0].mxu0
    %v277 = vpop.f32.mrb[0].mxu0
    %v278 = vpop.f32.mrb[0].mxu0
    %279 = vdwg.mxu0
    %v280 = vrot.slane %v275, 4
    %v281 = vadd.f32 %v275, %v280
    %v282 = vrot.slane %v281, 2
    %v283 = vadd.f32 %v281, %v282
    %v284 = vrot.slane %v283, 1
    %v285 = vadd.f32 %v283, %v284
    %v286 = vmul.f32 %v275, %v275
    %v287 = vrot.slane %v286, 4
    %v288 = vadd.f32 %v286, %v287
    %v289 = vrot.slane %v288, 2
    %v290 = vadd.f32 %v288, %v289
    %v291 = vrot.slane %v290, 1
    %v292 = vadd.f32 %v290, %v291
    %v293 = vmul.f32 %v285, 0.125
    %v294 = vmul.f32 %v292, 0.125
    %v295 = vmul.f32 %v293, %v293
    %v296 = vsub.f32 %v294, %v295
    %v297 = vadd.f32 %v296, 1e-05
    %v298 = vrsqrt.pop %v297
    %v299 = vmul.f32 %v77, %v298
    %v300 = vmul.f32 %v293, %v299
    %v301 = vsub.f32 %v78, %v300
    %v302 = vlaneseq
    %v303 = vshrl.u32 %v302, 7
    %v304 = vsub.s32 0, %v303
    %v305 = vrot.slane %v299, %v304
    %v306 = vmul.f32 %v275, %v305
    %v307 = vlaneseq
    %v308 = vshrl.u32 %v307, 7
    %v309 = vsub.s32 0, %v308
    %v310 = vrot.slane %v301, %v309
    %v311 = vadd.f32 %v306, %v310
    %v312 = vmax.f32 %v311, 0.0
    %v313 = vpack.c.bf16 %v312, %v312
    %v314 = vld [vmem:[#allocation8] sm:$0xf]
    %v315 = vld [vmem:[#allocation8 + $0x4] sm:$0xf]
    %v316 = vld [vmem:[#allocation8 + $0x8] sm:$0xf]
    %v317 = vld [vmem:[#allocation8 + $0xc] sm:$0xf]
    %v318 = vld [vmem:[#allocation8 + $0x10] sm:$0xf]
    %v319 = vld [vmem:[#allocation8 + $0x14] sm:$0xf]
    %v320 = vld [vmem:[#allocation8 + $0x18] sm:$0xf]
    %v321 = vld [vmem:[#allocation8 + $0x1c] sm:$0xf]
    %v322 = vld [vmem:[#allocation8 + $0x20] sm:$0xf]
    %v323 = vld [vmem:[#allocation8 + $0x24] sm:$0xf]
    %v324 = vld [vmem:[#allocation8 + $0x28] sm:$0xf]
    %v325 = vld [vmem:[#allocation8 + $0x2c] sm:$0xf]
    %v326 = vld [vmem:[#allocation8 + $0x30] sm:$0xf]
    %v327 = vld [vmem:[#allocation8 + $0x34] sm:$0xf]
    %v328 = vld [vmem:[#allocation8 + $0x38] sm:$0xf]
    %v329 = vld [vmem:[#allocation8 + $0x3c] sm:$0xf]
    %v330 = vlaneseq
    %v331 = vshrl.u32 %v330, 7
    %v332 = vsub.s32 0, %v331
    %v333 = vrot.slane %v79, %v332
    %v350 = vunpack.c.l.b16 %v314
    %v351 = vunpack.c.l.b16 %v315
    %v352 = vunpack.c.l.b16 %v316
    %v353 = vunpack.c.l.b16 %v317
    %v354 = vunpack.c.l.b16 %v318
    %v355 = vunpack.c.l.b16 %v319
    %v356 = vunpack.c.l.b16 %v320
    %v357 = vunpack.c.l.b16 %v321
    %v358 = vunpack.c.l.b16 %v322
    %v359 = vunpack.c.l.b16 %v323
    %v360 = vunpack.c.l.b16 %v324
    %v361 = vunpack.c.l.b16 %v325
    %v362 = vunpack.c.l.b16 %v326
    %v363 = vunpack.c.l.b16 %v327
    %v364 = vunpack.c.l.b16 %v328
    %v365 = vunpack.c.l.b16 %v329
    %v366 = vpack.c.b16 %v351, %v350
    %v367 = vpack.c.b16 %v353, %v352
    %v368 = vpack.c.b16 %v355, %v354
    %v369 = vpack.c.b16 %v357, %v356
    %v370 = vpack.c.b16 %v359, %v358
    %v371 = vpack.c.b16 %v361, %v360
    %v372 = vpack.c.b16 %v363, %v362
    %v373 = vpack.c.b16 %v365, %v364
    %382 = vmatprep.subr.bf16.mxu0 0
    %383 = vmatpush1.bf16.msra.mxu0 %v366
    %384 = vmatprep.subr.bf16.mxu0 0
    %385 = vmatpush1.bf16.msra.mxu0 %v367
    %386 = vmatprep.subr.bf16.mxu0 0
    %387 = vmatpush1.bf16.msra.mxu0 %v368
    %388 = vmatprep.subr.bf16.mxu0 0
    %389 = vmatpush1.bf16.msra.mxu0 %v369
    %390 = vmatprep.subr.bf16.mxu0 0
    %391 = vmatpush1.bf16.msra.mxu0 %v370
    %392 = vmatprep.subr.bf16.mxu0 0
    %393 = vmatpush1.bf16.msra.mxu0 %v371
    %394 = vmatprep.subr.bf16.mxu0 0
    %395 = vmatpush1.bf16.msra.mxu0 %v372
    %396 = vmatprep.subr.bf16.mxu0 0
    %397 = vmatpush1.bf16.msra.mxu0 %v373
    %398 = vmatprep.subr.bf16.mxu0 0
    %399 = vmatpush1.bf16.msra.mxu0 0
    %400 = vmatprep.subr.bf16.mxu0 0
    %401 = vmatpush1.bf16.msra.mxu0 0
    %402 = vmatprep.subr.bf16.mxu0 0
    %403 = vmatpush1.bf16.msra.mxu0 0
    %404 = vmatprep.subr.bf16.mxu0 0
    %405 = vmatpush1.bf16.msra.mxu0 0
    %406 = vmatprep.subr.bf16.mxu0 0
    %407 = vmatpush1.bf16.msra.mxu0 0
    %408 = vmatprep.subr.bf16.mxu0 0
    %409 = vmatpush1.bf16.msra.mxu0 0
    %410 = vmatprep.subr.bf16.mxu0 0
    %411 = vmatpush1.bf16.msra.mxu0 0
    %412 = vmatprep.subr.bf16.mxu0 0
    %413 = vmatpush1.bf16.msra.mxu0 0
    %414 = vmatprep.mubr.bf16.mxu0 0
    %415 = vmatmul.mubr.bf16.gmra.mrb[0].mxu0 %v313
    %v416 = vpop.f32.mrb[0].mxu0
    %v417 = vadd.f32 %v333, %v416
    %v418 = vpop.f32.mrb[0].mxu0
    %v419 = vpop.f32.mrb[0].mxu0
    %v420 = vpop.f32.mrb[0].mxu0
    %421 = vdwg.mxu0
    %v422 = vtanh.pop %v417
    %423 = vst [vmem:[#allocation10] sm:$0xff] %v422
    // Predicated region
    $region38: #{tpu_custom_call.1} parent=1 // pred_check
      _
    $region39: #{tpu_custom_call.1} parent=1 // pred_check_branch
      %425 = sbr.rel (0) target = $region41
    $region40: #{tpu_custom_call.1} parent=1 // pred_region
      %s427 = ssub.s32 128, 128
      %428 = vsyncadd [#allocation4], %s427
      %s430 = sshll.u32 [#allocation10], 4
      %s431 = int_to_ptr.vmem [resolvable:$true] %s430
      %433 = dma.vmem_to_hbm [thread:$0]  %s431, 128, %s5, [#allocation4]
    $region41: #{tpu_custom_call.1} parent=1 // pred_fallthru
      _
    // Predicated region
    $region42: #{tpu_custom_call.1} parent=1 // pred_check
      _
    $region43: #{tpu_custom_call.1} parent=1 // pred_check_branch
      %435 = sbr.rel (0) target = $region45
    $region44: #{tpu_custom_call.1} parent=1 // pred_region
      %436 = dma.done [#allocation4], 128
    $region45: #{tpu_custom_call.1} parent=1 // pred_fallthru
      _
    %437 = vsyncpa [#allocation3], 1
    %438 = vsyncpa [#allocation6], 1
    %439 = vsyncpa [#allocation9], 1
    %440 = vsyncpa [#allocation4], 1

</llo_original>
